<compile_context>
chip_gen: v6e
topology: v6e:2x2x1
jax: 0.10.0
libtpu: 0.0.40
codegen_flags: <defaults>
</compile_context>

<pallas_src>
import jax
import jax.numpy as jnp
from jax.experimental import pallas as pl
from jax.experimental.pallas import tpu as pltpu


# --------------------------------- kernel ------------------------------------
def pa_kernel(x_ref, w_ref, b_ref, out_ref):
    # x_ref/out_ref: (Nb, C, TS)   w_ref: (C, C)   b_ref: (C, 1)
    w = w_ref[...].astype(jnp.float32)             # (C_out, C_in)
    b = b_ref[...].astype(jnp.float32)             # (C_out, 1)
    nb = x_ref.shape[0]
    # Nb is a small static int -> unrolled Python loop keeps every matmul a
    # plain 2-D (C,C)x(C,TS) MXU op (no batched-dot relayout needed).
    for i in range(nb):
        x = x_ref[i]                               # (C, TS), lane-dense
        xf = x.astype(jnp.float32)
        # 1x1x1 conv == channel matmul; f32 accumulation on the MXU.
        # TODO(synk): precision=jax.lax.Precision.HIGHEST is free here
        # (MXU <5% occupied) and would tighten tolerances further.
        y = jnp.dot(w, xf, preferred_element_type=jnp.float32) + b
        y = jax.nn.sigmoid(y)
        out_ref[i] = (xf * y).astype(out_ref.dtype)


# ------------------------------ tiling helpers --------------------------------
_TS_CANDIDATES = (65536, 32768, 16384, 8192, 4096, 2048, 1024, 512, 256, 128)


def _default_max_tile():
    """Generation-aware spatial-tile cap (guarded: never breaks compilation)."""
    try:
        info = pltpu.get_tpu_info()
        # v7x-class parts: 64 MiB VMEM/TC but ~2.3x the HBM BW of v6e -> the
        # break-even tile is ~2x larger.  v5e/v6e (128 MiB VMEM) saturate at
        # 16-32K lanes.
        if info.vmem_capacity_bytes <= (64 << 20):
            return 65536
    except Exception:
        pass
    return 32768


def _pick_spatial_tile(S, max_tile, max_pad_frac=0.125):
    """Largest lane-dense tile (multiple of 128) with bounded zero-padding.

    Returns (TS, S_padded) with S_padded a multiple of TS (>= S).
    """
    s128 = pl.cdiv(S, 128) * 128
    for t in _TS_CANDIDATES:
        if t > max_tile:
            continue
        padded = pl.cdiv(S, t) * t
        if padded <= int(s128 * (1.0 + max_pad_frac)) or t == 128:
            return t, padded
    return 128, s128


def _pick_batch_fold(N, TS, num_s_tiles, target_lanes=16384, min_steps=2):
    """Fold Nb batch entries per block when S alone is too small per step,
    while keeping at least `min_steps` grid steps (megacore / pipeline)."""
    target = max(1, target_lanes // TS)
    best = 1
    for nb in range(1, N + 1):
        if N % nb:
            continue
        if nb > target:
            break
        if (N // nb) * num_s_tiles >= min_steps:
            best = nb
    return best


# --------------------------------- wrapper ------------------------------------
def pa_forward(x_ncdhw, conv_w, conv_b, *, max_tile=None):
    """PA forward: out = x * sigmoid(Conv3d_1x1(x)).

    x_ncdhw: (N, C, D, H, W)  (f32 or bf16 — bf16 I/O halves HBM traffic)
    conv_w:  (C_out, C_in, 1, 1, 1)
    conv_b:  (C_out,)
    """
    N, C, D, H, W = x_ncdhw.shape
    S = D * H * W
    if max_tile is None:
        max_tile = _default_max_tile()

    TS, S_pad = _pick_spatial_tile(S, max_tile)
    num_s_tiles = S_pad // TS

    # Lane-dense layout: channels on sublanes, flattened DHW on lanes.
    x_flat = x_ncdhw.reshape(N, C, S)
    if S_pad != S:
        x_flat = jnp.pad(x_flat, ((0, 0), (0, 0), (0, S_pad - S)))

    Nb = _pick_batch_fold(N, TS, num_s_tiles)
    grid = (N // Nb, num_s_tiles)

    w_mat = conv_w[:, :, 0, 0, 0].astype(jnp.float32)      # (C_out, C_in)
    b_col = conv_b.reshape(C, 1).astype(jnp.float32)

    # Scoped-VMEM budget: double-buffered input + output blocks, plus headroom
    # for resident weights / internal scratch.  Capped at 64 MiB (v7x physical).
    blk_in = Nb * C * TS * x_flat.dtype.itemsize
    blk_out = Nb * C * TS * jnp.dtype(x_ncdhw.dtype).itemsize
    vmem_limit = int(min(max(32 << 20, 2 * (blk_in + blk_out) + (8 << 20)),
                         64 << 20))

    out_flat = pl.pallas_call(
        pa_kernel,
        out_shape=jax.ShapeDtypeStruct((N, C, S_pad), x_ncdhw.dtype),
        grid=grid,
        in_specs=[
            pl.BlockSpec((Nb, C, TS), lambda n, s: (n, 0, s)),
            pl.BlockSpec((C, C), lambda n, s: (0, 0)),      # resident weights
            pl.BlockSpec((C, 1), lambda n, s: (0, 0)),      # resident bias
        ],
        out_specs=pl.BlockSpec((Nb, C, TS), lambda n, s: (n, 0, s)),
        compiler_params=pltpu.CompilerParams(
            dimension_semantics=("parallel", "parallel"),
            vmem_limit_bytes=vmem_limit),
    )(x_flat, w_mat, b_col)

    if S_pad != S:
        out_flat = out_flat[:, :, :S]
    return out_flat.reshape(N, C, D, H, W)


# ----------------------------- pure-JAX reference -----------------------------
def pa_ref(x, conv_w, conv_b):
    w = conv_w[:, :, 0, 0, 0].astype(jnp.float32)           # (O, I)
    y = jnp.einsum("oi,nidhw->nodhw", w, x.astype(jnp.float32),
                   precision=jax.lax.Precision.HIGHEST)
    y = y + conv_b.astype(jnp.float32)[None, :, None, None, None]
    y = jax.nn.sigmoid(y)
    return (x.astype(jnp.float32) * y).astype(x.dtype)


# ------------------------------------ main ------------------------------------
if __name__ == "__main__":
    nf = 8                          # channels (fills the 8 sublanes)
    N, D, H, W = 2, 8, 16, 16       # spatial -> S = 2048 lanes

    key = jax.random.PRNGKey(0)
    kx, kw, kb = jax.random.split(key, 3)

    x = jax.random.normal(kx, (N, nf, D, H, W), jnp.float32)
    conv_w = jax.random.normal(kw, (nf, nf, 1, 1, 1), jnp.float32) * 0.1
    conv_b = jax.random.normal(kb, (nf,), jnp.float32) * 0.1

    out = jax.block_until_ready(pa_forward(x, conv_w, conv_b))
    ref = jax.block_until_ready(pa_ref(x, conv_w, conv_b))

    assert out.shape == (N, nf, D, H, W)
    assert jnp.allclose(out, ref, atol=1e-2, rtol=1e-2), (
        float(jnp.max(jnp.abs(out - ref))))

    # Exercise the padded-S path (S = 231, not a multiple of 128).
    x2 = jax.random.normal(kx, (2, nf, 3, 7, 11), jnp.float32)
    out2 = jax.block_until_ready(pa_forward(x2, conv_w, conv_b))
    ref2 = jax.block_until_ready(pa_ref(x2, conv_w, conv_b))
    assert out2.shape == x2.shape
    assert jnp.allclose(out2, ref2, atol=1e-2, rtol=1e-2), (
        float(jnp.max(jnp.abs(out2 - ref2))))

    print("KERNEL_OK")
</pallas_src>

<mosaic_0001>
module attributes {stable_mosaic.version = 11 : i64} {
  func.func @pa_kernel(%arg0: i32, %arg1: i32, %arg2: memref<1x8x2048xf32, #tpu.memory_space<vmem>>, %arg3: memref<8x8xf32, #tpu.memory_space<vmem>>, %arg4: memref<8x1xf32, #tpu.memory_space<vmem>>, %arg5: memref<1x8x2048xf32, #tpu.memory_space<vmem>>) attributes {dimension_semantics = [#tpu.dimension_semantics<parallel>, #tpu.dimension_semantics<parallel>], iteration_bounds = array<i64: 2, 1>, scalar_prefetch = 0 : i64, scratch_operands = 0 : i64, tpu.core_type = #tpu.core_type<tc>, window_params = [{transform_indices = @transform_0, window_bounds = array<i64: 1, 8, 2048>}, {pipeline_mode = #tpu.pipeline_mode<synchronous>, transform_indices = @transform_1, window_bounds = array<i64: 8, 8>}, {pipeline_mode = #tpu.pipeline_mode<synchronous>, transform_indices = @transform_2, window_bounds = array<i64: 8, 1>}, {transform_indices = @transform_3, window_bounds = array<i64: 1, 8, 2048>}]} {
    %c0 = arith.constant 0 : index
    %c0_0 = arith.constant 0 : index
    %0 = vector.load %arg3[%c0, %c0_0] : memref<8x8xf32, #tpu.memory_space<vmem>>, vector<8x8xf32>
    %c0_1 = arith.constant 0 : index
    %c0_2 = arith.constant 0 : index
    %1 = vector.load %arg4[%c0_1, %c0_2] : memref<8x1xf32, #tpu.memory_space<vmem>>, vector<8x1xf32>
    %c0_3 = arith.constant 0 : index
    %c0_4 = arith.constant 0 : index
    %c0_5 = arith.constant 0 : index
    %2 = vector.load %arg2[%c0_3, %c0_4, %c0_5] : memref<1x8x2048xf32, #tpu.memory_space<vmem>>, vector<1x8x2048xf32>
    %3 = vector.shape_cast %2 : vector<1x8x2048xf32> to vector<8x2048xf32>
    %cst = arith.constant dense<0.000000e+00> : vector<8x2048xf32>
    %4 = tpu.matmul %0, %3, %cst {dimension_numbers = #tpu.dot_dimension_numbers<[1], [0], [0], [1], [0, 0, 1, 1], [], []>} : vector<8x8xf32>, vector<8x2048xf32>, vector<8x2048xf32> -> vector<8x2048xf32>
    %5 = vector.broadcast %1 : vector<8x1xf32> to vector<8x2048xf32>
    %6 = arith.addf %4, %5 : vector<8x2048xf32>
    %7 = arith.negf %6 : vector<8x2048xf32>
    %8 = math.exp %7 : vector<8x2048xf32>
    %cst_6 = arith.constant 1.000000e+00 : f32
    %9 = vector.broadcast %cst_6 : f32 to vector<8x2048xf32>
    %10 = arith.addf %9, %8 : vector<8x2048xf32>
    %11 = arith.divf %9, %10 : vector<8x2048xf32>
    %12 = arith.mulf %3, %11 : vector<8x2048xf32>
    %c0_7 = arith.constant 0 : index
    %c0_8 = arith.constant 0 : index
    %c0_9 = arith.constant 0 : index
    %13 = vector.load %arg5[%c0_7, %c0_8, %c0_9] : memref<1x8x2048xf32, #tpu.memory_space<vmem>>, vector<1x8x2048xf32>
    %14 = vector.shape_cast %13 : vector<1x8x2048xf32> to vector<8x2048xf32>
    %15 = vector.shape_cast %12 : vector<8x2048xf32> to vector<1x8x2048xf32>
    tpu.vector_store %arg5[%c0_7, %c0_8, %c0_9], %15 {strides = array<i32>} : memref<1x8x2048xf32, #tpu.memory_space<vmem>>, vector<1x8x2048xf32>,
    return
  }
  func.func @transform_0(%arg0: i32, %arg1: i32) -> (i32, i32, i32) {
    %c0_i32 = arith.constant 0 : i32
    %c0_i32_0 = arith.constant 0 : i32
    return %arg0, %c0_i32, %arg1 : i32, i32, i32
  }
  func.func @transform_1(%arg0: i32, %arg1: i32) -> (i32, i32) {
    %c0_i32 = arith.constant 0 : i32
    %c0_i32_0 = arith.constant 0 : i32
    %c0_i32_1 = arith.constant 0 : i32
    return %c0_i32, %c0_i32_0 : i32, i32
  }
  func.func @transform_2(%arg0: i32, %arg1: i32) -> (i32, i32) {
    %c0_i32 = arith.constant 0 : i32
    %c0_i32_0 = arith.constant 0 : i32
    %c0_i32_1 = arith.constant 0 : i32
    return %c0_i32, %c0_i32_0 : i32, i32
  }
  func.func @transform_3(%arg0: i32, %arg1: i32) -> (i32, i32, i32) {
    %c0_i32 = arith.constant 0 : i32
    %c0_i32_0 = arith.constant 0 : i32
    return %arg0, %c0_i32, %arg1 : i32, i32, i32
  }
}

</mosaic_0001>

<llo_original>
// kernel: tpu_custom_call.1
$region0: #{tpu_custom_call.1}
  #allocation0 [shape = 'u32[]', space=smem, size = 0x4, offset = 0x4, fixed_abs, tag = 'smem constant byte address 0x4 - core index']
  #allocation1 [shape = 'u32[144,128]{1,0:T(1,128)}', space=vmem, size = 0x12000, scoped, tag = 'internal scratch']
  %s0 = inlined_call_operand.hbm [shape: f32[2,8,2048], index: 0, kind: input, shape index: {}]
  %s1 = inlined_call_operand.vmem [shape: f32[8,8], index: 1, kind: input, shape index: {}]
  %s2 = inlined_call_operand.vmem [shape: f32[8,1], index: 2, kind: input, shape index: {}]
  %s3 = inlined_call_operand.hbm [shape: f32[2,8,2048], index: 3, kind: output, shape index: {}]
  %s4 = sld [smem:[#allocation0]]
  $region49: #{tpu_custom_call.1} parent=0
    _
  %s6 = ssub.s32 1, %s4
  %s7 = scalar_select 0, %s6, %s4
  $region1: #{tpu_custom_call.1} parent=0
    #allocation2 [shape = 'u8[131072]{0}', space=vmem, size = 0x20000, scoped, tag = 'input window, operand 0']
    #allocation3 [shape = 's32[2]{0}', space=sflag, size = 0x8, scoped, tag = 'scoped memory for tpu_custom_call.1']
    #allocation4 [shape = 's32[2]{0}', space=sflag, size = 0x8, scoped, tag = 'scoped memory for tpu_custom_call.1']
    #allocation5 [shape = 'u8[131072]{0}', space=vmem, size = 0x20000, scoped, tag = 'output window, operand 0']
    %8 = vsyncpa [#allocation3], 0
    %s9 = scalar_lea.sflag [#allocation3], 1
    %10 = vsyncpa %s9, 0
    %11 = vsyncpa [#allocation4], 0
    %s12 = scalar_lea.sflag [#allocation4], 1
    %13 = vsyncpa %s12, 0
    loop: start=0, step=1, limit=4
    $region2: #{tpu_custom_call.1} parent=1 // loop_pre_header
      _
    $region3: #{tpu_custom_call.1} parent=1 // loop_header
      %s15 = sphi 0, %s19
      %p16 = scmp.ge.s32.totalorder %s15, 4
      %s22 = sphi 0, %s34
      %s23 = sphi 0, %s30
      %s24 = sphi 0, %s22
      %s25 = sphi 0, %s23
      %s26 = sphi 0, %s24
      %s27 = sphi 0, %s25
      %s39 = sphi 0, %s41
      %s42 = sphi 0, %s39
      %s43 = sphi 0, %s42
      %s59 = sphi 0, %s43
      %s63 = sphi 0, %s63
      %s65 = sphi 0, %s63
      %s66 = sphi 0, %s65
      %s80 = sphi 0, %s66
      %s84 = sphi 0, %s84
      %s86 = sphi 0, %s84
      %s87 = sphi 0, %s86
      %s101 = sphi 0, %s87
      %s109 = sphi 0, %s111
      %s112 = sphi 0, %s109
      %s113 = sphi 0, %s112
      %s129 = sphi 0, %s113
    $region4: #{tpu_custom_call.1} parent=1 // loop_header_branch
      %18 = sbr.rel (%p16) target = $region8
    $region5: #{tpu_custom_call.1} parent=1 // loop_body
      %s20 = ssub.s32 %s15, 1
      %s21 = ssub.s32 %s15, 2
      %s28 = sadd.s32 1, %s23
      %p29 = scmp.ge.s32.totalorder %s28, 1
      %s30 = scalar_select %p29, 0, %s28
      %s31 = sadd.s32 1, %s22
      %s32 = scalar_select %p29, %s31, %s22
      %p33 = scmp.ge.s32.totalorder %s32, 2
      %s34 = scalar_select %p33, 0, %s32
      %s35 = ssub.s32 %s22, %s34
      %s36 = ssub.s32 %s23, %s30
      %s37 = sor.u32 %s35, %s36
      %p38 = scmp.eq.s32.totalorder %s37, 0
      %s40 = sadd.s32 %s39, 1
      %s41 = scalar_select %p38, %s39, %s40
      %p44 = pneg %p38
      %p45 = scmp.eq.s32.totalorder %s15, 1
      %p46 = por %p44, %p45
      %p47 = scmp.ne.s32.totalorder %s39, %s42
      %p48 = scmp.eq.s32.totalorder %s15, 0
      %p49 = por %p47, %p48
      %p50 = scmp.ne.s32.totalorder %s39, %s42
      %p51 = scmp.eq.s32.totalorder %s20, 1
      %p52 = por %p50, %p51
      %p53 = scmp.ne.s32.totalorder %s42, %s43
      %p54 = scmp.eq.s32.totalorder %s20, 0
      %p55 = por %p53, %p54
      %p56 = scmp.ne.s32.totalorder %s42, %s43
      %p57 = scmp.eq.s32.totalorder %s21, 1
      %p58 = por %p56, %p57
      %p60 = scmp.ne.s32.totalorder %s43, %s59
      %p61 = scmp.eq.s32.totalorder %s21, 0
      %p62 = por %p60, %p61
      %s64 = sadd.s32 %s63, 1
      %p67 = scmp.eq.s32.totalorder %s15, 1
      %p68 = scmp.ne.s32.totalorder %s63, %s65
      %p69 = scmp.eq.s32.totalorder %s15, 0
      %p70 = por %p68, %p69
      %p71 = scmp.ne.s32.totalorder %s63, %s65
      %p72 = scmp.eq.s32.totalorder %s20, 1
      %p73 = por %p71, %p72
      %p74 = scmp.ne.s32.totalorder %s65, %s66
      %p75 = scmp.eq.s32.totalorder %s20, 0
      %p76 = por %p74, %p75
      %p77 = scmp.ne.s32.totalorder %s65, %s66
      %p78 = scmp.eq.s32.totalorder %s21, 1
      %p79 = por %p77, %p78
      %p81 = scmp.ne.s32.totalorder %s66, %s80
      %p82 = scmp.eq.s32.totalorder %s21, 0
      %p83 = por %p81, %p82
      %s85 = sadd.s32 %s84, 1
      %p88 = scmp.eq.s32.totalorder %s15, 1
      %p89 = scmp.ne.s32.totalorder %s84, %s86
      %p90 = scmp.eq.s32.totalorder %s15, 0
      %p91 = por %p89, %p90
      %p92 = scmp.ne.s32.totalorder %s84, %s86
      %p93 = scmp.eq.s32.totalorder %s20, 1
      %p94 = por %p92, %p93
      %p95 = scmp.ne.s32.totalorder %s86, %s87
      %p96 = scmp.eq.s32.totalorder %s20, 0
      %p97 = por %p95, %p96
      %p98 = scmp.ne.s32.totalorder %s86, %s87
      %p99 = scmp.eq.s32.totalorder %s21, 1
      %p100 = por %p98, %p99
      %p102 = scmp.ne.s32.totalorder %s87, %s101
      %p103 = scmp.eq.s32.totalorder %s21, 0
      %p104 = por %p102, %p103
      %s105 = ssub.s32 %s22, %s34
      %s106 = ssub.s32 %s23, %s30
      %s107 = sor.u32 %s105, %s106
      %p108 = scmp.eq.s32.totalorder %s107, 0
      %s110 = sadd.s32 %s109, 1
      %s111 = scalar_select %p108, %s109, %s110
      %p114 = pneg %p108
      %p115 = scmp.eq.s32.totalorder %s15, 1
      %p116 = por %p114, %p115
      %p117 = scmp.ne.s32.totalorder %s109, %s112
      %p118 = scmp.eq.s32.totalorder %s15, 0
      %p119 = por %p117, %p118
      %p120 = scmp.ne.s32.totalorder %s109, %s112
      %p121 = scmp.eq.s32.totalorder %s20, 1
      %p122 = por %p120, %p121
      %p123 = scmp.ne.s32.totalorder %s112, %s113
      %p124 = scmp.eq.s32.totalorder %s20, 0
      %p125 = por %p123, %p124
      %p126 = scmp.ne.s32.totalorder %s112, %s113
      %p127 = scmp.eq.s32.totalorder %s21, 1
      %p128 = por %p126, %p127
      %p130 = scmp.ne.s32.totalorder %s113, %s129
      %p131 = scmp.eq.s32.totalorder %s21, 0
      %p132 = por %p130, %p131
      %p133 = scmp.le.s32.totalorder 1, %s15
      %p134 = scmp.lt.s32.totalorder %s15, 3
      %p135 = pnand %p133, %p134
      %p136 = pneg %p135
      // Predicated region
      $region9: #{tpu_custom_call.1} parent=5 // pred_check
        _
      $region10: #{tpu_custom_call.1} parent=5 // pred_check_branch
        %138 = sbr.rel (%p135) target = $region12
      $region11: #{tpu_custom_call.1} parent=5 // pred_region
        %s139 = ssub.s32 %s15, 1
        // Predicated region
        $region13: #{tpu_custom_call.1} parent=11 // pred_check
          %p140 = pneg %p76
        $region14: #{tpu_custom_call.1} parent=11 // pred_check_branch
          %142 = sbr.rel (%p140) target = $region16
        $region15: #{tpu_custom_call.1} parent=11 // pred_region
          _
        $region16: #{tpu_custom_call.1} parent=11 // pred_fallthru
          _
        // Predicated region
        $region17: #{tpu_custom_call.1} parent=11 // pred_check
          %p143 = pneg %p97
        $region18: #{tpu_custom_call.1} parent=11 // pred_check_branch
          %145 = sbr.rel (%p143) target = $region20
        $region19: #{tpu_custom_call.1} parent=11 // pred_region
          _
        $region20: #{tpu_custom_call.1} parent=11 // pred_fallthru
          _
      $region12: #{tpu_custom_call.1} parent=5 // pred_fallthru
        _
      %p146 = scmp.lt.s32.totalorder %s15, 2
      // Predicated region
      $region21: #{tpu_custom_call.1} parent=5 // pred_check
        %p147 = pneg %p146
      $region22: #{tpu_custom_call.1} parent=5 // pred_check_branch
        %149 = sbr.rel (%p147) target = $region24
      $region23: #{tpu_custom_call.1} parent=5 // pred_region
        // Predicated region
        $region25: #{tpu_custom_call.1} parent=23 // pred_check
          %p150 = pneg %p49
        $region26: #{tpu_custom_call.1} parent=23 // pred_check_branch
          %152 = sbr.rel (%p150) target = $region28
        $region27: #{tpu_custom_call.1} parent=23 // pred_region
          %s153 = sand.u32 %s39, 1
          %s154 = scalar_lea.sflag [#allocation3], %s153
          %s155 = sand.u32 %s39, 1
          %s156 = smul.addr %s155, 128
          %s157 = scalar_lea.vmem [#allocation2], %s156
          %s158 = smul.u32 16, %s23
          %s160 = ssub.s32 2048, 2048
          %161 = vsyncadd %s154, %s160
          %s162 = smul.addr %s22, 16
          %s163 = sadd.s32 %s158, %s162
          %s164 = smul.addr %s163, 128
          %s165 = scalar_lea.hbm %s0, %s164
          %s167 = sshll.u32 %s157, 4
          %s168 = int_to_ptr.vmem [resolvable:$true] %s167
          %170 = dma.hbm_to_vmem [thread:$0]  %s165, 2048, %s168, %s154
        $region28: #{tpu_custom_call.1} parent=23 // pred_fallthru
          _
      $region24: #{tpu_custom_call.1} parent=5 // pred_fallthru
        _
      %p171 = scmp.le.s32.totalorder 1, %s15
      %p172 = scmp.lt.s32.totalorder %s15, 3
      %p173 = pnand %p171, %p172
      %p174 = pneg %p173
      // Predicated region
      $region29: #{tpu_custom_call.1} parent=5 // pred_check
        _
      $region30: #{tpu_custom_call.1} parent=5 // pred_check_branch
        %176 = sbr.rel (%p173) target = $region32
      $region31: #{tpu_custom_call.1} parent=5 // pred_region
        %s177 = ssub.s32 %s15, 1
        %s178 = sand.u32 %s42, 1
        %s179 = scalar_lea.sflag [#allocation3], %s178
        %s180 = sand.u32 %s42, 1
        %s181 = smul.addr %s180, 128
        %s182 = scalar_lea.vmem [#allocation2], %s181
        // Predicated region
        $region33: #{tpu_custom_call.1} parent=31 // pred_check
          %p183 = pneg %p55
        $region34: #{tpu_custom_call.1} parent=31 // pred_check_branch
          %185 = sbr.rel (%p183) target = $region36
        $region35: #{tpu_custom_call.1} parent=31 // pred_region
          %186 = dma.done %s179, 2048
        $region36: #{tpu_custom_call.1} parent=31 // pred_fallthru
          _
        %s187 = sand.u32 %s42, 1
        %s188 = scalar_lea.sflag [#allocation3], %s187
        %s189 = sand.u32 %s42, 1
        %s190 = smul.addr %s189, 128
        %s191 = scalar_lea.vmem [#allocation2], %s190
        %p192 = pneg %p55
        %p193 = pneg %p52
        %p194 = pneg %p76
        %p195 = pneg %p73
        %p196 = pneg %p97
        %p197 = pneg %p94
        %p198 = pneg %p125
        %p199 = pneg %p122
        %s200 = sand.u32 %s112, 1
        %s201 = scalar_lea.sflag [#allocation4], %s200
        %s202 = sand.u32 %s112, 1
        %s203 = smul.addr %s202, 128
        %s204 = scalar_lea.vmem [#allocation5], %s203
        %s205 = smul.u32 16, %s25
        %s206 = smul.u32 16, %s25
        %v207 = vld [vmem:[%s1] sm:$0xff]
        %v208 = vld [vmem:[%s2] sm:$0xff]
        %v209 = vld [vmem:[%s182] sm:$0xff]
        %v210 = vld [vmem:[%s182 + $0x8] sm:$0xff]
        %v211 = vld [vmem:[%s182 + $0x10] sm:$0xff]
        %v212 = vld [vmem:[%s182 + $0x18] sm:$0xff]
        %v213 = vld [vmem:[%s182 + $0x20] sm:$0xff]
        %v214 = vld [vmem:[%s182 + $0x28] sm:$0xff]
        %v215 = vld [vmem:[%s182 + $0x30] sm:$0xff]
        %v216 = vld [vmem:[%s182 + $0x38] sm:$0xff]
        %v217 = vld [vmem:[%s182 + $0x40] sm:$0xff]
        %v218 = vld [vmem:[%s182 + $0x48] sm:$0xff]
        %v219 = vld [vmem:[%s182 + $0x50] sm:$0xff]
        %v220 = vld [vmem:[%s182 + $0x58] sm:$0xff]
        %v221 = vld [vmem:[%s182 + $0x60] sm:$0xff]
        %v222 = vld [vmem:[%s182 + $0x68] sm:$0xff]
        %v223 = vld [vmem:[%s182 + $0x70] sm:$0xff]
        %v224 = vld [vmem:[%s182 + $0x78] sm:$0xff]
        %226 = vset.pattern.permute.xlu0 0
        %227 = vperm.xlu0 %226, %v208
        %v228 = vpop.permute.xlu0 %227
        %vm230 = vcmask 64512
        %v232 = vsel %vm230, %v207, 0
        %234 = vmatprep.subr.mxu0 0.0
        %235 = vmatpush1.msra.mxu0 0.0
        %236 = vmatprep.subr.mxu0 0.0
        %237 = vmatpush1.msra.mxu0 0.0
        %238 = vmatprep.subr.mxu0 0.0
        %239 = vmatpush1.msra.mxu0 0.0
        %240 = vmatprep.subr.mxu0 0.0
        %241 = vmatpush1.msra.mxu0 0.0
        %242 = vmatprep.subr.mxu0 0.0
        %243 = vmatpush1.msra.mxu0 0.0
        %244 = vmatprep.subr.mxu0 0.0
        %245 = vmatpush1.msra.mxu0 0.0
        %246 = vmatprep.subr.mxu0 0.0
        %247 = vmatpush1.msra.mxu0 0.0
        %248 = vmatprep.subr.mxu0 0.0
        %249 = vmatpush1.msra.mxu0 0.0
        %250 = vmatprep.subr.mxu0 0.0
        %251 = vmatpush1.msra.mxu0 0.0
        %252 = vmatprep.subr.mxu0 0.0
        %253 = vmatpush1.msra.mxu0 0.0
        %254 = vmatprep.subr.mxu0 0.0
        %255 = vmatpush1.msra.mxu0 0.0
        %256 = vmatprep.subr.mxu0 0.0
        %257 = vmatpush1.msra.mxu0 0.0
        %258 = vmatprep.subr.mxu0 0.0
        %259 = vmatpush1.msra.mxu0 0.0
        %260 = vmatprep.subr.mxu0 0.0
        %261 = vmatpush1.msra.mxu0 0.0
        %262 = vmatprep.subr.mxu0 0.0
        %263 = vmatpush1.msra.mxu0 0.0
        %264 = vmatprep.subr.mxu0 %v210
        %265 = vmatpush1.msra.mxu0 %v209
        %266 = vmatprep.subr.mxu0 0.0
        %267 = vmatpush2.msra.mxu0 0.0
        %268 = vmatprep.subr.mxu0 0.0
        %269 = vmatpush2.msra.mxu0 0.0
        %270 = vmatprep.subr.mxu0 0.0
        %271 = vmatpush2.msra.mxu0 0.0
        %272 = vmatprep.subr.mxu0 0.0
        %273 = vmatpush2.msra.mxu0 0.0
        %274 = vmatprep.subr.mxu0 0.0
        %275 = vmatpush2.msra.mxu0 0.0
        %276 = vmatprep.subr.mxu0 0.0
        %277 = vmatpush2.msra.mxu0 0.0
        %278 = vmatprep.subr.mxu0 0.0
        %279 = vmatpush2.msra.mxu0 0.0
        %280 = vmatprep.subr.mxu0 0.0
        %281 = vmatpush2.msra.mxu0 0.0
        %282 = vmatprep.subr.mxu0 0.0
        %283 = vmatpush2.msra.mxu0 0.0
        %284 = vmatprep.subr.mxu0 0.0
        %285 = vmatpush2.msra.mxu0 0.0
        %286 = vmatprep.subr.mxu0 0.0
        %287 = vmatpush2.msra.mxu0 0.0
        %288 = vmatprep.subr.mxu0 0.0
        %289 = vmatpush2.msra.mxu0 0.0
        %290 = vmatprep.subr.mxu0 0.0
        %291 = vmatpush2.msra.mxu0 0.0
        %292 = vmatprep.subr.mxu0 0.0
        %293 = vmatpush2.msra.mxu0 0.0
        %294 = vmatprep.subr.mxu0 0.0
        %295 = vmatpush2.msra.mxu0 0.0
        %296 = vmatprep.subr.mxu0 0.0
        %297 = vmatpush2.msra.mxu0 0.0
        %298 = vmatprep.mubr.f32.mxu0 0.0
        %299 = vmatmul.mubr.f32.gmra.mxu0 %v232
        %v300 = vpop.f32.mrf.mxu0
        %v301 = vadd.f32 %v228, %v300
        %v302 = vpop.f32.mrf.mxu0
        %v303 = vadd.f32 %v228, %v302
        %304 = vdwg.mxu0
        %305 = vmatprep.subr.mxu0 0.0
        %306 = vmatpush1.msra.mxu0 0.0
        %307 = vmatprep.subr.mxu0 0.0
        %308 = vmatpush1.msra.mxu0 0.0
        %309 = vmatprep.subr.mxu0 0.0
        %310 = vmatpush1.msra.mxu0 0.0
        %311 = vmatprep.subr.mxu0 0.0
        %312 = vmatpush1.msra.mxu0 0.0
        %313 = vmatprep.subr.mxu0 0.0
        %314 = vmatpush1.msra.mxu0 0.0
        %315 = vmatprep.subr.mxu0 0.0
        %316 = vmatpush1.msra.mxu0 0.0
        %317 = vmatprep.subr.mxu0 0.0
        %318 = vmatpush1.msra.mxu0 0.0
        %319 = vmatprep.subr.mxu0 0.0
        %320 = vmatpush1.msra.mxu0 0.0
        %321 = vmatprep.subr.mxu0 0.0
        %322 = vmatpush1.msra.mxu0 0.0
        %323 = vmatprep.subr.mxu0 0.0
        %324 = vmatpush1.msra.mxu0 0.0
        %325 = vmatprep.subr.mxu0 0.0
        %326 = vmatpush1.msra.mxu0 0.0
        %327 = vmatprep.subr.mxu0 0.0
        %328 = vmatpush1.msra.mxu0 0.0
        %329 = vmatprep.subr.mxu0 0.0
        %330 = vmatpush1.msra.mxu0 0.0
        %331 = vmatprep.subr.mxu0 0.0
        %332 = vmatpush1.msra.mxu0 0.0
        %333 = vmatprep.subr.mxu0 0.0
        %334 = vmatpush1.msra.mxu0 0.0
        %335 = vmatprep.subr.mxu0 %v212
        %336 = vmatpush1.msra.mxu0 %v211
        %337 = vmatprep.subr.mxu0 0.0
        %338 = vmatpush2.msra.mxu0 0.0
        %339 = vmatprep.subr.mxu0 0.0
        %340 = vmatpush2.msra.mxu0 0.0
        %341 = vmatprep.subr.mxu0 0.0
        %342 = vmatpush2.msra.mxu0 0.0
        %343 = vmatprep.subr.mxu0 0.0
        %344 = vmatpush2.msra.mxu0 0.0
        %345 = vmatprep.subr.mxu0 0.0
        %346 = vmatpush2.msra.mxu0 0.0
        %347 = vmatprep.subr.mxu0 0.0
        %348 = vmatpush2.msra.mxu0 0.0
        %349 = vmatprep.subr.mxu0 0.0
        %350 = vmatpush2.msra.mxu0 0.0
        %351 = vmatprep.subr.mxu0 0.0
        %352 = vmatpush2.msra.mxu0 0.0
        %353 = vmatprep.subr.mxu0 0.0
        %354 = vmatpush2.msra.mxu0 0.0
        %355 = vmatprep.subr.mxu0 0.0
        %356 = vmatpush2.msra.mxu0 0.0
        %357 = vmatprep.subr.mxu0 0.0
        %358 = vmatpush2.msra.mxu0 0.0
        %359 = vmatprep.subr.mxu0 0.0
        %360 = vmatpush2.msra.mxu0 0.0
        %361 = vmatprep.subr.mxu0 0.0
        %362 = vmatpush2.msra.mxu0 0.0
        %363 = vmatprep.subr.mxu0 0.0
        %364 = vmatpush2.msra.mxu0 0.0
        %365 = vmatprep.subr.mxu0 0.0
        %366 = vmatpush2.msra.mxu0 0.0
        %367 = vmatprep.subr.mxu0 0.0
        %368 = vmatpush2.msra.mxu0 0.0
        %369 = vmatprep.mubr.f32.mxu0 0.0
        %370 = vmatmul.mubr.f32.gmra.mxu0 %v232
        %v371 = vpop.f32.mrf.mxu0
        %v372 = vadd.f32 %v228, %v371
        %v373 = vpop.f32.mrf.mxu0
        %v374 = vadd.f32 %v228, %v373
        %375 = vdwg.mxu0
        %376 = vmatprep.subr.mxu0 0.0
        %377 = vmatpush1.msra.mxu0 0.0
        %378 = vmatprep.subr.mxu0 0.0
        %379 = vmatpush1.msra.mxu0 0.0
        %380 = vmatprep.subr.mxu0 0.0
        %381 = vmatpush1.msra.mxu0 0.0
        %382 = vmatprep.subr.mxu0 0.0
        %383 = vmatpush1.msra.mxu0 0.0
        %384 = vmatprep.subr.mxu0 0.0
        %385 = vmatpush1.msra.mxu0 0.0
        %386 = vmatprep.subr.mxu0 0.0
        %387 = vmatpush1.msra.mxu0 0.0
        %388 = vmatprep.subr.mxu0 0.0
        %389 = vmatpush1.msra.mxu0 0.0
        %390 = vmatprep.subr.mxu0 0.0
        %391 = vmatpush1.msra.mxu0 0.0
        %392 = vmatprep.subr.mxu0 0.0
        %393 = vmatpush1.msra.mxu0 0.0
        %394 = vmatprep.subr.mxu0 0.0
        %395 = vmatpush1.msra.mxu0 0.0
        %396 = vmatprep.subr.mxu0 0.0
        %397 = vmatpush1.msra.mxu0 0.0
        %398 = vmatprep.subr.mxu0 0.0
        %399 = vmatpush1.msra.mxu0 0.0
        %400 = vmatprep.subr.mxu0 0.0
        %401 = vmatpush1.msra.mxu0 0.0
        %402 = vmatprep.subr.mxu0 0.0
        %403 = vmatpush1.msra.mxu0 0.0
        %404 = vmatprep.subr.mxu0 0.0
        %405 = vmatpush1.msra.mxu0 0.0
        %406 = vmatprep.subr.mxu0 %v214
        %407 = vmatpush1.msra.mxu0 %v213
        %408 = vmatprep.subr.mxu0 0.0
        %409 = vmatpush2.msra.mxu0 0.0
        %410 = vmatprep.subr.mxu0 0.0
        %411 = vmatpush2.msra.mxu0 0.0
        %412 = vmatprep.subr.mxu0 0.0
        %413 = vmatpush2.msra.mxu0 0.0
        %414 = vmatprep.subr.mxu0 0.0
        %415 = vmatpush2.msra.mxu0 0.0
        %416 = vmatprep.subr.mxu0 0.0
        %417 = vmatpush2.msra.mxu0 0.0
        %418 = vmatprep.subr.mxu0 0.0
        %419 = vmatpush2.msra.mxu0 0.0
        %420 = vmatprep.subr.mxu0 0.0
        %421 = vmatpush2.msra.mxu0 0.0
        %422 = vmatprep.subr.mxu0 0.0
        %423 = vmatpush2.msra.mxu0 0.0
        %424 = vmatprep.subr.mxu0 0.0
        %425 = vmatpush2.msra.mxu0 0.0
        %426 = vmatprep.subr.mxu0 0.0
        %427 = vmatpush2.msra.mxu0 0.0
        %428 = vmatprep.subr.mxu0 0.0
        %429 = vmatpush2.msra.mxu0 0.0
        %430 = vmatprep.subr.mxu0 0.0
        %431 = vmatpush2.msra.mxu0 0.0
        %432 = vmatprep.subr.mxu0 0.0
        %433 = vmatpush2.msra.mxu0 0.0
        %434 = vmatprep.subr.mxu0 0.0
        %435 = vmatpush2.msra.mxu0 0.0
        %436 = vmatprep.subr.mxu0 0.0
        %437 = vmatpush2.msra.mxu0 0.0
        %438 = vmatprep.subr.mxu0 0.0
        %439 = vmatpush2.msra.mxu0 0.0
        %440 = vmatprep.mubr.f32.mxu0 0.0
        %441 = vmatmul.mubr.f32.gmra.mxu0 %v232
        %v442 = vpop.f32.mrf.mxu0
        %v443 = vadd.f32 %v228, %v442
        %v444 = vpop.f32.mrf.mxu0
        %v445 = vadd.f32 %v228, %v444
        %446 = vdwg.mxu0
        %447 = vmatprep.subr.mxu0 0.0
        %448 = vmatpush1.msra.mxu0 0.0
        %449 = vmatprep.subr.mxu0 0.0
        %450 = vmatpush1.msra.mxu0 0.0
        %451 = vmatprep.subr.mxu0 0.0
        %452 = vmatpush1.msra.mxu0 0.0
        %453 = vmatprep.subr.mxu0 0.0
        %454 = vmatpush1.msra.mxu0 0.0
        %455 = vmatprep.subr.mxu0 0.0
        %456 = vmatpush1.msra.mxu0 0.0
        %457 = vmatprep.subr.mxu0 0.0
        %458 = vmatpush1.msra.mxu0 0.0
        %459 = vmatprep.subr.mxu0 0.0
        %460 = vmatpush1.msra.mxu0 0.0
        %461 = vmatprep.subr.mxu0 0.0
        %462 = vmatpush1.msra.mxu0 0.0
        %463 = vmatprep.subr.mxu0 0.0
        %464 = vmatpush1.msra.mxu0 0.0
        %465 = vmatprep.subr.mxu0 0.0
        %466 = vmatpush1.msra.mxu0 0.0
        %467 = vmatprep.subr.mxu0 0.0
        %468 = vmatpush1.msra.mxu0 0.0
        %469 = vmatprep.subr.mxu0 0.0
        %470 = vmatpush1.msra.mxu0 0.0
        %471 = vmatprep.subr.mxu0 0.0
        %472 = vmatpush1.msra.mxu0 0.0
        %473 = vmatprep.subr.mxu0 0.0
        %474 = vmatpush1.msra.mxu0 0.0
        %475 = vmatprep.subr.mxu0 0.0
        %476 = vmatpush1.msra.mxu0 0.0
        %477 = vmatprep.subr.mxu0 %v216
        %478 = vmatpush1.msra.mxu0 %v215
        %479 = vmatprep.subr.mxu0 0.0
        %480 = vmatpush2.msra.mxu0 0.0
        %481 = vmatprep.subr.mxu0 0.0
        %482 = vmatpush2.msra.mxu0 0.0
        %483 = vmatprep.subr.mxu0 0.0
        %484 = vmatpush2.msra.mxu0 0.0
        %485 = vmatprep.subr.mxu0 0.0
        %486 = vmatpush2.msra.mxu0 0.0
        %487 = vmatprep.subr.mxu0 0.0
        %488 = vmatpush2.msra.mxu0 0.0
        %489 = vmatprep.subr.mxu0 0.0
        %490 = vmatpush2.msra.mxu0 0.0
        %491 = vmatprep.subr.mxu0 0.0
        %492 = vmatpush2.msra.mxu0 0.0
        %493 = vmatprep.subr.mxu0 0.0
        %494 = vmatpush2.msra.mxu0 0.0
        %495 = vmatprep.subr.mxu0 0.0
        %496 = vmatpush2.msra.mxu0 0.0
        %497 = vmatprep.subr.mxu0 0.0
        %498 = vmatpush2.msra.mxu0 0.0
        %499 = vmatprep.subr.mxu0 0.0
        %500 = vmatpush2.msra.mxu0 0.0
        %501 = vmatprep.subr.mxu0 0.0
        %502 = vmatpush2.msra.mxu0 0.0
        %503 = vmatprep.subr.mxu0 0.0
        %504 = vmatpush2.msra.mxu0 0.0
        %505 = vmatprep.subr.mxu0 0.0
        %506 = vmatpush2.msra.mxu0 0.0
        %507 = vmatprep.subr.mxu0 0.0
        %508 = vmatpush2.msra.mxu0 0.0
        %509 = vmatprep.subr.mxu0 0.0
        %510 = vmatpush2.msra.mxu0 0.0
        %511 = vmatprep.mubr.f32.mxu0 0.0
        %512 = vmatmul.mubr.f32.gmra.mxu0 %v232
        %v513 = vpop.f32.mrf.mxu0
        %v514 = vadd.f32 %v228, %v513
        %v515 = vpop.f32.mrf.mxu0
        %v516 = vadd.f32 %v228, %v515
        %517 = vdwg.mxu0
        %518 = vmatprep.subr.mxu0 0.0
        %519 = vmatpush1.msra.mxu0 0.0
        %520 = vmatprep.subr.mxu0 0.0
        %521 = vmatpush1.msra.mxu0 0.0
        %522 = vmatprep.subr.mxu0 0.0
        %523 = vmatpush1.msra.mxu0 0.0
        %524 = vmatprep.subr.mxu0 0.0
        %525 = vmatpush1.msra.mxu0 0.0
        %526 = vmatprep.subr.mxu0 0.0
        %527 = vmatpush1.msra.mxu0 0.0
        %528 = vmatprep.subr.mxu0 0.0
        %529 = vmatpush1.msra.mxu0 0.0
        %530 = vmatprep.subr.mxu0 0.0
        %531 = vmatpush1.msra.mxu0 0.0
        %532 = vmatprep.subr.mxu0 0.0
        %533 = vmatpush1.msra.mxu0 0.0
        %534 = vmatprep.subr.mxu0 0.0
        %535 = vmatpush1.msra.mxu0 0.0
        %536 = vmatprep.subr.mxu0 0.0
        %537 = vmatpush1.msra.mxu0 0.0
        %538 = vmatprep.subr.mxu0 0.0
        %539 = vmatpush1.msra.mxu0 0.0
        %540 = vmatprep.subr.mxu0 0.0
        %541 = vmatpush1.msra.mxu0 0.0
        %542 = vmatprep.subr.mxu0 0.0
        %543 = vmatpush1.msra.mxu0 0.0
        %544 = vmatprep.subr.mxu0 0.0
        %545 = vmatpush1.msra.mxu0 0.0
        %546 = vmatprep.subr.mxu0 0.0
        %547 = vmatpush1.msra.mxu0 0.0
        %548 = vmatprep.subr.mxu0 %v218
        %549 = vmatpush1.msra.mxu0 %v217
        %550 = vmatprep.subr.mxu0 0.0
        %551 = vmatpush2.msra.mxu0 0.0
        %552 = vmatprep.subr.mxu0 0.0
        %553 = vmatpush2.msra.mxu0 0.0
        %554 = vmatprep.subr.mxu0 0.0
        %555 = vmatpush2.msra.mxu0 0.0
        %556 = vmatprep.subr.mxu0 0.0
        %557 = vmatpush2.msra.mxu0 0.0
        %558 = vmatprep.subr.mxu0 0.0
        %559 = vmatpush2.msra.mxu0 0.0
        %560 = vmatprep.subr.mxu0 0.0
        %561 = vmatpush2.msra.mxu0 0.0
        %562 = vmatprep.subr.mxu0 0.0
        %563 = vmatpush2.msra.mxu0 0.0
        %564 = vmatprep.subr.mxu0 0.0
        %565 = vmatpush2.msra.mxu0 0.0
        %566 = vmatprep.subr.mxu0 0.0
        %567 = vmatpush2.msra.mxu0 0.0
        %568 = vmatprep.subr.mxu0 0.0
        %569 = vmatpush2.msra.mxu0 0.0
        %570 = vmatprep.subr.mxu0 0.0
        %571 = vmatpush2.msra.mxu0 0.0
        %572 = vmatprep.subr.mxu0 0.0
        %573 = vmatpush2.msra.mxu0 0.0
        %574 = vmatprep.subr.mxu0 0.0
        %575 = vmatpush2.msra.mxu0 0.0
        %576 = vmatprep.subr.mxu0 0.0
        %577 = vmatpush2.msra.mxu0 0.0
        %578 = vmatprep.subr.mxu0 0.0
        %579 = vmatpush2.msra.mxu0 0.0
        %580 = vmatprep.subr.mxu0 0.0
        %581 = vmatpush2.msra.mxu0 0.0
        %582 = vmatprep.mubr.f32.mxu0 0.0
        %583 = vmatmul.mubr.f32.gmra.mxu0 %v232
        %v584 = vpop.f32.mrf.mxu0
        %v585 = vadd.f32 %v228, %v584
        %v586 = vpop.f32.mrf.mxu0
        %v587 = vadd.f32 %v228, %v586
        %588 = vdwg.mxu0
        %589 = vmatprep.subr.mxu0 0.0
        %590 = vmatpush1.msra.mxu0 0.0
        %591 = vmatprep.subr.mxu0 0.0
        %592 = vmatpush1.msra.mxu0 0.0
        %593 = vmatprep.subr.mxu0 0.0
        %594 = vmatpush1.msra.mxu0 0.0
        %595 = vmatprep.subr.mxu0 0.0
        %596 = vmatpush1.msra.mxu0 0.0
        %597 = vmatprep.subr.mxu0 0.0
        %598 = vmatpush1.msra.mxu0 0.0
        %599 = vmatprep.subr.mxu0 0.0
        %600 = vmatpush1.msra.mxu0 0.0
        %601 = vmatprep.subr.mxu0 0.0
        %602 = vmatpush1.msra.mxu0 0.0
        %603 = vmatprep.subr.mxu0 0.0
        %604 = vmatpush1.msra.mxu0 0.0
        %605 = vmatprep.subr.mxu0 0.0
        %606 = vmatpush1.msra.mxu0 0.0
        %607 = vmatprep.subr.mxu0 0.0
        %608 = vmatpush1.msra.mxu0 0.0
        %609 = vmatprep.subr.mxu0 0.0
        %610 = vmatpush1.msra.mxu0 0.0
        %611 = vmatprep.subr.mxu0 0.0
        %612 = vmatpush1.msra.mxu0 0.0
        %613 = vmatprep.subr.mxu0 0.0
        %614 = vmatpush1.msra.mxu0 0.0
        %615 = vmatprep.subr.mxu0 0.0
        %616 = vmatpush1.msra.mxu0 0.0
        %617 = vmatprep.subr.mxu0 0.0
        %618 = vmatpush1.msra.mxu0 0.0
        %619 = vmatprep.subr.mxu0 %v220
        %620 = vmatpush1.msra.mxu0 %v219
        %621 = vmatprep.subr.mxu0 0.0
        %622 = vmatpush2.msra.mxu0 0.0
        %623 = vmatprep.subr.mxu0 0.0
        %624 = vmatpush2.msra.mxu0 0.0
        %625 = vmatprep.subr.mxu0 0.0
        %626 = vmatpush2.msra.mxu0 0.0
        %627 = vmatprep.subr.mxu0 0.0
        %628 = vmatpush2.msra.mxu0 0.0
        %629 = vmatprep.subr.mxu0 0.0
        %630 = vmatpush2.msra.mxu0 0.0
        %631 = vmatprep.subr.mxu0 0.0
        %632 = vmatpush2.msra.mxu0 0.0
        %633 = vmatprep.subr.mxu0 0.0
        %634 = vmatpush2.msra.mxu0 0.0
        %635 = vmatprep.subr.mxu0 0.0
        %636 = vmatpush2.msra.mxu0 0.0
        %637 = vmatprep.subr.mxu0 0.0
        %638 = vmatpush2.msra.mxu0 0.0
        %639 = vmatprep.subr.mxu0 0.0
        %640 = vmatpush2.msra.mxu0 0.0
        %641 = vmatprep.subr.mxu0 0.0
        %642 = vmatpush2.msra.mxu0 0.0
        %643 = vmatprep.subr.mxu0 0.0
        %644 = vmatpush2.msra.mxu0 0.0
        %645 = vmatprep.subr.mxu0 0.0
        %646 = vmatpush2.msra.mxu0 0.0
        %647 = vmatprep.subr.mxu0 0.0
        %648 = vmatpush2.msra.mxu0 0.0
        %649 = vmatprep.subr.mxu0 0.0
        %650 = vmatpush2.msra.mxu0 0.0
        %651 = vmatprep.subr.mxu0 0.0
        %652 = vmatpush2.msra.mxu0 0.0
        %653 = vmatprep.mubr.f32.mxu0 0.0
        %654 = vmatmul.mubr.f32.gmra.mxu0 %v232
        %v655 = vpop.f32.mrf.mxu0
        %v656 = vadd.f32 %v228, %v655
        %v657 = vpop.f32.mrf.mxu0
        %v658 = vadd.f32 %v228, %v657
        %659 = vdwg.mxu0
        %660 = vmatprep.subr.mxu0 0.0
        %661 = vmatpush1.msra.mxu0 0.0
        %662 = vmatprep.subr.mxu0 0.0
        %663 = vmatpush1.msra.mxu0 0.0
        %664 = vmatprep.subr.mxu0 0.0
        %665 = vmatpush1.msra.mxu0 0.0
        %666 = vmatprep.subr.mxu0 0.0
        %667 = vmatpush1.msra.mxu0 0.0
        %668 = vmatprep.subr.mxu0 0.0
        %669 = vmatpush1.msra.mxu0 0.0
        %670 = vmatprep.subr.mxu0 0.0
        %671 = vmatpush1.msra.mxu0 0.0
        %672 = vmatprep.subr.mxu0 0.0
        %673 = vmatpush1.msra.mxu0 0.0
        %674 = vmatprep.subr.mxu0 0.0
        %675 = vmatpush1.msra.mxu0 0.0
        %676 = vmatprep.subr.mxu0 0.0
        %677 = vmatpush1.msra.mxu0 0.0
        %678 = vmatprep.subr.mxu0 0.0
        %679 = vmatpush1.msra.mxu0 0.0
        %680 = vmatprep.subr.mxu0 0.0
        %681 = vmatpush1.msra.mxu0 0.0
        %682 = vmatprep.subr.mxu0 0.0
        %683 = vmatpush1.msra.mxu0 0.0
        %684 = vmatprep.subr.mxu0 0.0
        %685 = vmatpush1.msra.mxu0 0.0
        %686 = vmatprep.subr.mxu0 0.0
        %687 = vmatpush1.msra.mxu0 0.0
        %688 = vmatprep.subr.mxu0 0.0
        %689 = vmatpush1.msra.mxu0 0.0
        %690 = vmatprep.subr.mxu0 %v222
        %691 = vmatpush1.msra.mxu0 %v221
        %692 = vmatprep.subr.mxu0 0.0
        %693 = vmatpush2.msra.mxu0 0.0
        %694 = vmatprep.subr.mxu0 0.0
        %695 = vmatpush2.msra.mxu0 0.0
        %696 = vmatprep.subr.mxu0 0.0
        %697 = vmatpush2.msra.mxu0 0.0
        %698 = vmatprep.subr.mxu0 0.0
        %699 = vmatpush2.msra.mxu0 0.0
        %700 = vmatprep.subr.mxu0 0.0
        %701 = vmatpush2.msra.mxu0 0.0
        %702 = vmatprep.subr.mxu0 0.0
        %703 = vmatpush2.msra.mxu0 0.0
        %704 = vmatprep.subr.mxu0 0.0
        %705 = vmatpush2.msra.mxu0 0.0
        %706 = vmatprep.subr.mxu0 0.0
        %707 = vmatpush2.msra.mxu0 0.0
        %708 = vmatprep.subr.mxu0 0.0
        %709 = vmatpush2.msra.mxu0 0.0
        %710 = vmatprep.subr.mxu0 0.0
        %711 = vmatpush2.msra.mxu0 0.0
        %712 = vmatprep.subr.mxu0 0.0
        %713 = vmatpush2.msra.mxu0 0.0
        %714 = vmatprep.subr.mxu0 0.0
        %715 = vmatpush2.msra.mxu0 0.0
        %716 = vmatprep.subr.mxu0 0.0
        %717 = vmatpush2.msra.mxu0 0.0
        %718 = vmatprep.subr.mxu0 0.0
        %719 = vmatpush2.msra.mxu0 0.0
        %720 = vmatprep.subr.mxu0 0.0
        %721 = vmatpush2.msra.mxu0 0.0
        %722 = vmatprep.subr.mxu0 0.0
        %723 = vmatpush2.msra.mxu0 0.0
        %724 = vmatprep.mubr.f32.mxu0 0.0
        %725 = vmatmul.mubr.f32.gmra.mxu0 %v232
        %v726 = vpop.f32.mrf.mxu0
        %v727 = vadd.f32 %v228, %v726
        %v728 = vpop.f32.mrf.mxu0
        %v729 = vadd.f32 %v228, %v728
        %730 = vdwg.mxu0
        %731 = vmatprep.subr.mxu0 0.0
        %732 = vmatpush1.msra.mxu0 0.0
        %733 = vmatprep.subr.mxu0 0.0
        %734 = vmatpush1.msra.mxu0 0.0
        %735 = vmatprep.subr.mxu0 0.0
        %736 = vmatpush1.msra.mxu0 0.0
        %737 = vmatprep.subr.mxu0 0.0
        %738 = vmatpush1.msra.mxu0 0.0
        %739 = vmatprep.subr.mxu0 0.0
        %740 = vmatpush1.msra.mxu0 0.0
        %741 = vmatprep.subr.mxu0 0.0
        %742 = vmatpush1.msra.mxu0 0.0
        %743 = vmatprep.subr.mxu0 0.0
        %744 = vmatpush1.msra.mxu0 0.0
        %745 = vmatprep.subr.mxu0 0.0
        %746 = vmatpush1.msra.mxu0 0.0
        %747 = vmatprep.subr.mxu0 0.0
        %748 = vmatpush1.msra.mxu0 0.0
        %749 = vmatprep.subr.mxu0 0.0
        %750 = vmatpush1.msra.mxu0 0.0
        %751 = vmatprep.subr.mxu0 0.0
        %752 = vmatpush1.msra.mxu0 0.0
        %753 = vmatprep.subr.mxu0 0.0
        %754 = vmatpush1.msra.mxu0 0.0
        %755 = vmatprep.subr.mxu0 0.0
        %756 = vmatpush1.msra.mxu0 0.0
        %757 = vmatprep.subr.mxu0 0.0
        %758 = vmatpush1.msra.mxu0 0.0
        %759 = vmatprep.subr.mxu0 0.0
        %760 = vmatpush1.msra.mxu0 0.0
        %761 = vmatprep.subr.mxu0 %v224
        %762 = vmatpush1.msra.mxu0 %v223
        %763 = vmatprep.subr.mxu0 0.0
        %764 = vmatpush2.msra.mxu0 0.0
        %765 = vmatprep.subr.mxu0 0.0
        %766 = vmatpush2.msra.mxu0 0.0
        %767 = vmatprep.subr.mxu0 0.0
        %768 = vmatpush2.msra.mxu0 0.0
        %769 = vmatprep.subr.mxu0 0.0
        %770 = vmatpush2.msra.mxu0 0.0
        %771 = vmatprep.subr.mxu0 0.0
        %772 = vmatpush2.msra.mxu0 0.0
        %773 = vmatprep.subr.mxu0 0.0
        %774 = vmatpush2.msra.mxu0 0.0
        %775 = vmatprep.subr.mxu0 0.0
        %776 = vmatpush2.msra.mxu0 0.0
        %777 = vmatprep.subr.mxu0 0.0
        %778 = vmatpush2.msra.mxu0 0.0
        %779 = vmatprep.subr.mxu0 0.0
        %780 = vmatpush2.msra.mxu0 0.0
        %781 = vmatprep.subr.mxu0 0.0
        %782 = vmatpush2.msra.mxu0 0.0
        %783 = vmatprep.subr.mxu0 0.0
        %784 = vmatpush2.msra.mxu0 0.0
        %785 = vmatprep.subr.mxu0 0.0
        %786 = vmatpush2.msra.mxu0 0.0
        %787 = vmatprep.subr.mxu0 0.0
        %788 = vmatpush2.msra.mxu0 0.0
        %789 = vmatprep.subr.mxu0 0.0
        %790 = vmatpush2.msra.mxu0 0.0
        %791 = vmatprep.subr.mxu0 0.0
        %792 = vmatpush2.msra.mxu0 0.0
        %793 = vmatprep.subr.mxu0 0.0
        %794 = vmatpush2.msra.mxu0 0.0
        %795 = vmatprep.mubr.f32.mxu0 0.0
        %796 = vmatmul.mubr.f32.gmra.mxu0 %v232
        %v797 = vpop.f32.mrf.mxu0
        %v798 = vadd.f32 %v228, %v797
        %v799 = vpop.f32.mrf.mxu0
        %v800 = vadd.f32 %v228, %v799
        %801 = vdwg.mxu0
        %v802 = vxor.u32 %v301, 2147483648
        %v803 = vxor.u32 %v303, 2147483648
        %v804 = vxor.u32 %v372, 2147483648
        %v805 = vxor.u32 %v374, 2147483648
        %v806 = vxor.u32 %v443, 2147483648
        %v807 = vxor.u32 %v445, 2147483648
        %v808 = vxor.u32 %v514, 2147483648
        %v809 = vxor.u32 %v516, 2147483648
        %v810 = vxor.u32 %v585, 2147483648
        %v811 = vxor.u32 %v587, 2147483648
        %v812 = vxor.u32 %v656, 2147483648
        %v813 = vxor.u32 %v658, 2147483648
        %v814 = vxor.u32 %v727, 2147483648
        %v815 = vxor.u32 %v729, 2147483648
        %v816 = vxor.u32 %v798, 2147483648
        %v817 = vxor.u32 %v800, 2147483648
        %v818 = vmul.f32 %v802, 1.442695
        %v819 = vpow.pop %v818
        %v820 = vmul.f32 %v803, 1.442695
        %v821 = vpow.pop %v820
        %v822 = vmul.f32 %v804, 1.442695
        %v823 = vpow.pop %v822
        %v824 = vmul.f32 %v805, 1.442695
        %v825 = vpow.pop %v824
        %v826 = vmul.f32 %v806, 1.442695
        %v827 = vpow.pop %v826
        %v828 = vmul.f32 %v807, 1.442695
        %v829 = vpow.pop %v828
        %v830 = vmul.f32 %v808, 1.442695
        %v831 = vpow.pop %v830
        %v832 = vmul.f32 %v809, 1.442695
        %v833 = vpow.pop %v832
        %v834 = vmul.f32 %v810, 1.442695
        %v835 = vpow.pop %v834
        %v836 = vmul.f32 %v811, 1.442695
        %v837 = vpow.pop %v836
        %v838 = vmul.f32 %v812, 1.442695
        %v839 = vpow.pop %v838
        %v840 = vmul.f32 %v813, 1.442695
        %v841 = vpow.pop %v840
        %v842 = vmul.f32 %v814, 1.442695
        %v843 = vpow.pop %v842
        %v844 = vmul.f32 %v815, 1.442695
        %v845 = vpow.pop %v844
        %v846 = vmul.f32 %v816, 1.442695
        %v847 = vpow.pop %v846
        %v848 = vmul.f32 %v817, 1.442695
        %v849 = vpow.pop %v848
        %v850 = vadd.f32 %v819, 1.0
        %v851 = vadd.f32 %v821, 1.0
        %v852 = vadd.f32 %v823, 1.0
        %v853 = vadd.f32 %v825, 1.0
        %v854 = vadd.f32 %v827, 1.0
        %v855 = vadd.f32 %v829, 1.0
        %v856 = vadd.f32 %v831, 1.0
        %v857 = vadd.f32 %v833, 1.0
        %v858 = vadd.f32 %v835, 1.0
        %v859 = vadd.f32 %v837, 1.0
        %v860 = vadd.f32 %v839, 1.0
        %v861 = vadd.f32 %v841, 1.0
        %v862 = vadd.f32 %v843, 1.0
        %v863 = vadd.f32 %v845, 1.0
        %v864 = vadd.f32 %v847, 1.0
        %v865 = vadd.f32 %v849, 1.0
        %v866 = vrcp.pop %v850
        %v867 = vmul.f32 1.0, %v866
        %v868 = vrcp.pop %v851
        %v869 = vmul.f32 1.0, %v868
        %v870 = vrcp.pop %v852
        %v871 = vmul.f32 1.0, %v870
        %v872 = vrcp.pop %v853
        %v873 = vmul.f32 1.0, %v872
        %v874 = vrcp.pop %v854
        %v875 = vmul.f32 1.0, %v874
        %v876 = vrcp.pop %v855
        %v877 = vmul.f32 1.0, %v876
        %v878 = vrcp.pop %v856
        %v879 = vmul.f32 1.0, %v878
        %v880 = vrcp.pop %v857
        %v881 = vmul.f32 1.0, %v880
        %v882 = vrcp.pop %v858
        %v883 = vmul.f32 1.0, %v882
        %v884 = vrcp.pop %v859
        %v885 = vmul.f32 1.0, %v884
        %v886 = vrcp.pop %v860
        %v887 = vmul.f32 1.0, %v886
        %v888 = vrcp.pop %v861
        %v889 = vmul.f32 1.0, %v888
        %v890 = vrcp.pop %v862
        %v891 = vmul.f32 1.0, %v890
        %v892 = vrcp.pop %v863
        %v893 = vmul.f32 1.0, %v892
        %v894 = vrcp.pop %v864
        %v895 = vmul.f32 1.0, %v894
        %v896 = vrcp.pop %v865
        %v897 = vmul.f32 1.0, %v896
        %v898 = vmul.f32 %v209, %v867
        %v899 = vmul.f32 %v210, %v869
        %v900 = vmul.f32 %v211, %v871
        %v901 = vmul.f32 %v212, %v873
        %v902 = vmul.f32 %v213, %v875
        %v903 = vmul.f32 %v214, %v877
        %v904 = vmul.f32 %v215, %v879
        %v905 = vmul.f32 %v216, %v881
        %v906 = vmul.f32 %v217, %v883
        %v907 = vmul.f32 %v218, %v885
        %v908 = vmul.f32 %v219, %v887
        %v909 = vmul.f32 %v220, %v889
        %v910 = vmul.f32 %v221, %v891
        %v911 = vmul.f32 %v222, %v893
        %v912 = vmul.f32 %v223, %v895
        %v913 = vmul.f32 %v224, %v897
        %914 = vst [vmem:[%s204] sm:$0xff] %v898
        %915 = vst [vmem:[%s204 + $0x8] sm:$0xff] %v899
        %916 = vst [vmem:[%s204 + $0x10] sm:$0xff] %v900
        %917 = vst [vmem:[%s204 + $0x18] sm:$0xff] %v901
        %918 = vst [vmem:[%s204 + $0x20] sm:$0xff] %v902
        %919 = vst [vmem:[%s204 + $0x28] sm:$0xff] %v903
        %920 = vst [vmem:[%s204 + $0x30] sm:$0xff] %v904
        %921 = vst [vmem:[%s204 + $0x38] sm:$0xff] %v905
        %922 = vst [vmem:[%s204 + $0x40] sm:$0xff] %v906
        %923 = vst [vmem:[%s204 + $0x48] sm:$0xff] %v907
        %924 = vst [vmem:[%s204 + $0x50] sm:$0xff] %v908
        %925 = vst [vmem:[%s204 + $0x58] sm:$0xff] %v909
        %926 = vst [vmem:[%s204 + $0x60] sm:$0xff] %v910
        %927 = vst [vmem:[%s204 + $0x68] sm:$0xff] %v911
        %928 = vst [vmem:[%s204 + $0x70] sm:$0xff] %v912
        %929 = vst [vmem:[%s204 + $0x78] sm:$0xff] %v913
        %s930 = sand.u32 %s112, 1
        %s931 = scalar_lea.sflag [#allocation4], %s930
        %s932 = sand.u32 %s112, 1
        %s933 = smul.addr %s932, 128
        %s934 = scalar_lea.vmem [#allocation5], %s933
        // Predicated region
        $region37: #{tpu_custom_call.1} parent=31 // pred_check
          %p935 = pneg %p122
        $region38: #{tpu_custom_call.1} parent=31 // pred_check_branch
          %937 = sbr.rel (%p935) target = $region40
        $region39: #{tpu_custom_call.1} parent=31 // pred_region
          %s938 = smul.u32 16, %s25
          %s940 = ssub.s32 2048, 2048
          %941 = vsyncadd %s931, %s940
          %s942 = smul.addr %s24, 16
          %s943 = sadd.s32 %s938, %s942
          %s944 = smul.addr %s943, 128
          %s945 = scalar_lea.hbm %s3, %s944
          %s947 = sshll.u32 %s934, 4
          %s948 = int_to_ptr.vmem [resolvable:$true] %s947
          %950 = dma.vmem_to_hbm [thread:$0]  %s948, 2048, %s945, %s931
        $region40: #{tpu_custom_call.1} parent=31 // pred_fallthru
          _
      $region32: #{tpu_custom_call.1} parent=5 // pred_fallthru
        _
      %p951 = scmp.le.s32.totalorder 2, %s15
      // Predicated region
      $region41: #{tpu_custom_call.1} parent=5 // pred_check
        %p952 = pneg %p951
      $region42: #{tpu_custom_call.1} parent=5 // pred_check_branch
        %954 = sbr.rel (%p952) target = $region44
      $region43: #{tpu_custom_call.1} parent=5 // pred_region
        %s955 = ssub.s32 %s15, 2
        // Predicated region
        $region45: #{tpu_custom_call.1} parent=43 // pred_check
          %p956 = pneg %p128
        $region46: #{tpu_custom_call.1} parent=43 // pred_check_branch
          %958 = sbr.rel (%p956) target = $region48
        $region47: #{tpu_custom_call.1} parent=43 // pred_region
          %s959 = sand.u32 %s113, 1
          %s960 = scalar_lea.sflag [#allocation4], %s959
          %s961 = sand.u32 %s113, 1
          %s962 = smul.addr %s961, 128
          %s963 = scalar_lea.vmem [#allocation5], %s962
          %964 = dma.done %s960, 2048
        $region48: #{tpu_custom_call.1} parent=43 // pred_fallthru
          _
      $region44: #{tpu_custom_call.1} parent=5 // pred_fallthru
        _
    $region6: #{tpu_custom_call.1} parent=1 // loop_footer
      %s19 = sadd.s32 1, %s15
    $region7: #{tpu_custom_call.1} parent=1 // loop_footer_branch
      %14 = sbr.rel target = $region3
    $region8: #{tpu_custom_call.1} parent=1 // loop_exit
      _
    %965 = vsyncpa [#allocation3], 1
    %s966 = scalar_lea.sflag [#allocation3], 1
    %967 = vsyncpa %s966, 1
    %968 = vsyncpa [#allocation4], 1
    %s969 = scalar_lea.sflag [#allocation4], 1
    %970 = vsyncpa %s969, 1

</llo_original>
